<compile_context>
chip_gen: v7x
topology: tpu7x:2x2x1
jax: 0.10.0
libtpu: 0.0.40
codegen_flags: <defaults>
</compile_context>

<pallas_src>
import jax
import jax.numpy as jnp
from jax.experimental import pallas as pl
from jax.experimental.pallas import tpu as pltpu


# ---------------------------------------------------------------- kernel ----

def mlp_kernel(x_ref, w1_ref, b1_ref, w2_ref, b2_ref, w3_ref, b3_ref, o_ref):
    # layer 1: Linear + Tanh (MXU matmul, VPU add, EUP tanh), f32 accumulate
    x = x_ref[...].astype(w1_ref.dtype)
    h = jnp.dot(x, w1_ref[...], preferred_element_type=jnp.float32)
    h = jnp.tanh(h + b1_ref[...])
    # layer 2: Linear + Tanh (hidden width lane-padded to a multiple of 128)
    h = jnp.dot(h.astype(w2_ref.dtype), w2_ref[...],
                preferred_element_type=jnp.float32)
    h = jnp.tanh(h + b2_ref[...])
    # output layer: Linear (logits), lane-dense padded width -> unmasked vst
    o = jnp.dot(h.astype(w3_ref.dtype), w3_ref[...],
                preferred_element_type=jnp.float32)
    o_ref[...] = (o + b3_ref[...]).astype(o_ref.dtype)


# --------------------------------------------------------------- helpers ----

def _round_up(n, m):
    return ((n + m - 1) // m) * m


_TB_MAX = 512            # max batch-tile rows for large B (review: 512-1024)
_SINGLE_TILE_MAX = 256   # up to here: one grid step (launch latency dominates)


def _choose_tiling(B):
    """Pad-aware batch tiling.

    Small B  -> one tile covering the whole (8-rounded) batch, single step.
    Large B  -> n_tiles = max(2, cdiv(B, 512)) so the 'parallel' grid axis has
                at least 2 steps for v7x's two TensorCores, with the tile
                sized from cdiv(B, n_tiles) so padding is < 8 rows per tile.
    """
    b8 = _round_up(B, 8)
    if b8 <= _SINGLE_TILE_MAX:
        tb = b8
    else:
        n_tiles = max(2, pl.cdiv(b8, _TB_MAX))
        tb = _round_up(pl.cdiv(B, n_tiles), 8)
    b_pad = _round_up(B, tb)
    return tb, b_pad


def prepare_params(params, *, weights_dtype=jnp.float32):
    """ONE-TIME parameter prep (hoisted out of the per-call hot path).

    * Pads hidden widths and the output width to multiples of 128 so every
      intermediate activation and the final store are lane-dense.
    * Optionally casts weights to bf16 (biases stay f32).  Padding is exact:
      padded hidden units evaluate to tanh(0)=0 and multiply zero rows of the
      following weight; padded output columns are sliced off by the wrapper.

    Returns (prepped_params, odim).
    """
    (w1, b1), (w2, b2), (w3, b3) = params
    idim, nh1 = w1.shape
    nh2 = w2.shape[1]
    odim = w3.shape[1]
    h1 = _round_up(nh1, 128)
    h2 = _round_up(nh2, 128)
    n_out = _round_up(odim, 128)

    def pad2(a, rows, cols, dtype):
        if a.shape == (rows, cols) and a.dtype == dtype:
            return a.astype(dtype)
        out = jnp.zeros((rows, cols), dtype)
        return out.at[: a.shape[0], : a.shape[1]].set(a.astype(dtype))

    prepped = (
        pad2(w1, idim, h1, weights_dtype), pad2(b1, 1, h1, jnp.float32),
        pad2(w2, h1, h2, weights_dtype),   pad2(b2, 1, h2, jnp.float32),
        pad2(w3, h2, n_out, weights_dtype), pad2(b3, 1, n_out, jnp.float32),
    )
    # Materialize now so the pad/cast never re-runs per forward call.
    prepped = tuple(jax.block_until_ready(p) for p in prepped)
    return prepped, odim


def _build_call(tb, idim, h1, h2, n_out, b_pad):
    """Build the pallas_call for padded batch b_pad / padded widths."""
    grid = (b_pad // tb,)

    def const_spec(shape):
        # Constant index map: same block index every grid step, so Pallas
        # keeps the weights/biases VMEM-resident (no re-DMA across steps).
        return pl.BlockSpec(shape, lambda *_: (0,) * len(shape))

    # Advisory cost estimate so XLA doesn't over-serialize around this op.
    flops = 2 * b_pad * (idim * h1 + h1 * h2 + h2 * n_out)
    transcendentals = b_pad * (h1 + h2)
    bytes_accessed = 4 * (b_pad * idim + b_pad * n_out) \
        + 4 * (idim * h1 + h1 * h2 + h2 * n_out + h1 + h2 + n_out)

    # VMEM budget: double-buffered x/out tiles + weights/biases (counted
    # double-buffered for slack) + activations.  Floor 16 MiB, cap below
    # v7x's 64 MiB physical so the tile choice is explicit.
    vmem_needed = 4 * (2 * tb * (idim + n_out)
                       + 2 * (idim * h1 + h1 * h2 + h2 * n_out
                              + h1 + h2 + n_out)
                       + tb * (h1 + h2))
    vmem_limit = int(min(max(2 * vmem_needed, 16 << 20), 48 << 20))

    return pl.pallas_call(
        mlp_kernel,
        out_shape=jax.ShapeDtypeStruct((b_pad, n_out), jnp.float32),
        grid_spec=pltpu.PrefetchScalarGridSpec(
            num_scalar_prefetch=0,
            grid=grid,
            in_specs=[
                pl.BlockSpec((tb, idim), lambda i: (i, 0)),      # x tile
                const_spec((idim, h1)), const_spec((1, h1)),     # layer 1
                const_spec((h1, h2)), const_spec((1, h2)),       # layer 2
                const_spec((h2, n_out)), const_spec((1, n_out)), # out layer
            ],
            out_specs=pl.BlockSpec((tb, n_out), lambda i: (i, 0)),
        ),
        compiler_params=pltpu.CompilerParams(
            dimension_semantics=("parallel",),
            vmem_limit_bytes=vmem_limit,
        ),
        cost_estimate=pl.CostEstimate(
            flops=flops,
            transcendentals=transcendentals,
            bytes_accessed=bytes_accessed,
        ),
    )


def mlp_forward(x, prepped_params, odim, *, tb=None):
    """Fused MLP forward on pre-padded params (see prepare_params)."""
    w1, b1, w2, b2, w3, b3 = prepped_params
    B, idim = x.shape
    h1 = w1.shape[1]
    h2 = w2.shape[1]
    n_out = w3.shape[1]

    if tb is None:
        tb, b_pad = _choose_tiling(B)
    else:
        tb = _round_up(min(tb, _round_up(B, 8)), 8)
        b_pad = _round_up(B, tb)

    # Ragged batch: pad to a whole number of tiles.  With pad-aware tiling
    # this is a no-op for aligned B and < 8 rows per tile otherwise.
    xp = x if b_pad == B else jnp.pad(x, ((0, b_pad - B), (0, 0)))

    out = _build_call(tb, idim, h1, h2, n_out, b_pad)(
        xp, w1, b1, w2, b2, w3, b3)
    return out[:B, :odim]


# --------------------------------------------------------- init / reference -

def init_linear(key, fan_in, fan_out):
    """PyTorch-style Linear init: U(-1/sqrt(fan_in), +1/sqrt(fan_in)).
    Weight stored as (fan_in, fan_out) = transpose of torch's (out, in)."""
    kw, kb = jax.random.split(key)
    bound = 1.0 / jnp.sqrt(fan_in)
    w = jax.random.uniform(kw, (fan_in, fan_out), jnp.float32, -bound, bound)
    b = jax.random.uniform(kb, (1, fan_out), jnp.float32, -bound, bound)
    return w, b


def reference_forward(x, params):
    (w1, b1), (w2, b2), (w3, b3) = params
    h = jnp.tanh(x @ w1 + b1)
    h = jnp.tanh(h @ w2 + b2)
    return h @ w3 + b3


# ------------------------------------------------------------------ main ----

if __name__ == "__main__":
    # Small shapes consistent with Net(idim, odim=2, nhid=[nh1, nh2], 'TANH')
    B, idim, nh1, nh2, odim = 16, 256, 128, 64, 2

    key = jax.random.PRNGKey(0)
    kx, k1, k2, k3, kx2 = jax.random.split(key, 5)

    x = jax.random.normal(kx, (B, idim), jnp.float32)
    params = (
        init_linear(k1, idim, nh1),
        init_linear(k2, nh1, nh2),
        init_linear(k3, nh2, odim),
    )

    # One-time param prep (padding / casts hoisted out of the hot path).
    prepped, odim_out = prepare_params(params)  # weights_dtype=jnp.bfloat16 optional

    fwd = jax.jit(lambda xb: mlp_forward(xb, prepped, odim_out))

    # Small-batch path: single grid step.
    out = jax.block_until_ready(fwd(x))
    ref = reference_forward(x, params)
    assert out.shape == (B, odim)
    assert jnp.allclose(out, ref, atol=1e-4, rtol=1e-4), "mismatch (small B)"

    # Ragged larger batch: exercises pad-aware multi-tile (>=2 parallel steps).
    B2 = 300
    x2 = jax.random.normal(kx2, (B2, idim), jnp.float32)
    out2 = jax.block_until_ready(fwd(x2))
    ref2 = reference_forward(x2, params)
    assert out2.shape == (B2, odim)
    assert jnp.allclose(out2, ref2, atol=1e-4, rtol=1e-4), "mismatch (large B)"

    # TODO(synk): nn.Dropout (p>0, train mode) not implemented — module default p=0.0.
    print("KERNEL_OK")
</pallas_src>

<mosaic_0001>
module attributes {stable_mosaic.version = 11 : i64} {
  func.func @mlp_kernel(%arg0: i32, %arg1: memref<16x256xf32, #tpu.memory_space<vmem>>, %arg2: memref<256x128xf32, #tpu.memory_space<vmem>>, %arg3: memref<1x128xf32, #tpu.memory_space<vmem>>, %arg4: memref<128x128xf32, #tpu.memory_space<vmem>>, %arg5: memref<1x128xf32, #tpu.memory_space<vmem>>, %arg6: memref<128x128xf32, #tpu.memory_space<vmem>>, %arg7: memref<1x128xf32, #tpu.memory_space<vmem>>, %arg8: memref<16x128xf32, #tpu.memory_space<vmem>>) attributes {dimension_semantics = [#tpu.dimension_semantics<parallel>], iteration_bounds = array<i64: 1>, scalar_prefetch = 0 : i64, scratch_operands = 0 : i64, tpu.core_type = #tpu.core_type<tc>, window_params = [{transform_indices = @transform_0, window_bounds = array<i64: 16, 256>}, {pipeline_mode = #tpu.pipeline_mode<synchronous>, transform_indices = @transform_1, window_bounds = array<i64: 256, 128>}, {pipeline_mode = #tpu.pipeline_mode<synchronous>, transform_indices = @transform_2, window_bounds = array<i64: 1, 128>}, {pipeline_mode = #tpu.pipeline_mode<synchronous>, transform_indices = @transform_3, window_bounds = array<i64: 128, 128>}, {pipeline_mode = #tpu.pipeline_mode<synchronous>, transform_indices = @transform_4, window_bounds = array<i64: 1, 128>}, {pipeline_mode = #tpu.pipeline_mode<synchronous>, transform_indices = @transform_5, window_bounds = array<i64: 128, 128>}, {pipeline_mode = #tpu.pipeline_mode<synchronous>, transform_indices = @transform_6, window_bounds = array<i64: 1, 128>}, {transform_indices = @transform_7, window_bounds = array<i64: 16, 128>}]} {
    %c0 = arith.constant 0 : index
    %c0_0 = arith.constant 0 : index
    %0 = vector.load %arg1[%c0, %c0_0] : memref<16x256xf32, #tpu.memory_space<vmem>>, vector<16x256xf32>
    %c0_1 = arith.constant 0 : index
    %c0_2 = arith.constant 0 : index
    %1 = vector.load %arg2[%c0_1, %c0_2] : memref<256x128xf32, #tpu.memory_space<vmem>>, vector<256x128xf32>
    %cst = arith.constant dense<0.000000e+00> : vector<16x128xf32>
    %2 = tpu.matmul %0, %1, %cst {dimension_numbers = #tpu.dot_dimension_numbers<[1], [0], [0], [1], [0, 0, 1, 1], [], []>} : vector<16x256xf32>, vector<256x128xf32>, vector<16x128xf32> -> vector<16x128xf32>
    %c0_3 = arith.constant 0 : index
    %c0_4 = arith.constant 0 : index
    %3 = vector.load %arg3[%c0_3, %c0_4] : memref<1x128xf32, #tpu.memory_space<vmem>>, vector<1x128xf32>
    %4 = vector.broadcast %3 : vector<1x128xf32> to vector<16x128xf32>
    %5 = arith.addf %2, %4 : vector<16x128xf32>
    %6 = math.tanh %5 : vector<16x128xf32>
    %c0_5 = arith.constant 0 : index
    %c0_6 = arith.constant 0 : index
    %7 = vector.load %arg4[%c0_5, %c0_6] : memref<128x128xf32, #tpu.memory_space<vmem>>, vector<128x128xf32>
    %cst_7 = arith.constant dense<0.000000e+00> : vector<16x128xf32>
    %8 = tpu.matmul %6, %7, %cst_7 {dimension_numbers = #tpu.dot_dimension_numbers<[1], [0], [0], [1], [0, 0, 1, 1], [], []>} : vector<16x128xf32>, vector<128x128xf32>, vector<16x128xf32> -> vector<16x128xf32>
    %c0_8 = arith.constant 0 : index
    %c0_9 = arith.constant 0 : index
    %9 = vector.load %arg5[%c0_8, %c0_9] : memref<1x128xf32, #tpu.memory_space<vmem>>, vector<1x128xf32>
    %10 = vector.broadcast %9 : vector<1x128xf32> to vector<16x128xf32>
    %11 = arith.addf %8, %10 : vector<16x128xf32>
    %12 = math.tanh %11 : vector<16x128xf32>
    %c0_10 = arith.constant 0 : index
    %c0_11 = arith.constant 0 : index
    %13 = vector.load %arg6[%c0_10, %c0_11] : memref<128x128xf32, #tpu.memory_space<vmem>>, vector<128x128xf32>
    %cst_12 = arith.constant dense<0.000000e+00> : vector<16x128xf32>
    %14 = tpu.matmul %12, %13, %cst_12 {dimension_numbers = #tpu.dot_dimension_numbers<[1], [0], [0], [1], [0, 0, 1, 1], [], []>} : vector<16x128xf32>, vector<128x128xf32>, vector<16x128xf32> -> vector<16x128xf32>
    %c0_13 = arith.constant 0 : index
    %c0_14 = arith.constant 0 : index
    %15 = vector.load %arg7[%c0_13, %c0_14] : memref<1x128xf32, #tpu.memory_space<vmem>>, vector<1x128xf32>
    %16 = vector.broadcast %15 : vector<1x128xf32> to vector<16x128xf32>
    %17 = arith.addf %14, %16 : vector<16x128xf32>
    %c0_15 = arith.constant 0 : index
    %c0_16 = arith.constant 0 : index
    %18 = vector.load %arg8[%c0_15, %c0_16] : memref<16x128xf32, #tpu.memory_space<vmem>>, vector<16x128xf32>
    tpu.vector_store %arg8[%c0_15, %c0_16], %17 {strides = array<i32>} : memref<16x128xf32, #tpu.memory_space<vmem>>, vector<16x128xf32>,
    return
  }
  func.func @transform_0(%arg0: i32) -> (i32, i32) {
    %c0_i32 = arith.constant 0 : i32
    %c0_i32_0 = arith.constant 0 : i32
    return %arg0, %c0_i32 : i32, i32
  }
  func.func @transform_1(%arg0: i32) -> (i32, i32) {
    %c0_i32 = arith.constant 0 : i32
    %c0_i32_0 = arith.constant 0 : i32
    %c0_i32_1 = arith.constant 0 : i32
    return %c0_i32, %c0_i32_0 : i32, i32
  }
  func.func @transform_2(%arg0: i32) -> (i32, i32) {
    %c0_i32 = arith.constant 0 : i32
    %c0_i32_0 = arith.constant 0 : i32
    %c0_i32_1 = arith.constant 0 : i32
    return %c0_i32, %c0_i32_0 : i32, i32
  }
  func.func @transform_3(%arg0: i32) -> (i32, i32) {
    %c0_i32 = arith.constant 0 : i32
    %c0_i32_0 = arith.constant 0 : i32
    %c0_i32_1 = arith.constant 0 : i32
    return %c0_i32, %c0_i32_0 : i32, i32
  }
  func.func @transform_4(%arg0: i32) -> (i32, i32) {
    %c0_i32 = arith.constant 0 : i32
    %c0_i32_0 = arith.constant 0 : i32
    %c0_i32_1 = arith.constant 0 : i32
    return %c0_i32, %c0_i32_0 : i32, i32
  }
  func.func @transform_5(%arg0: i32) -> (i32, i32) {
    %c0_i32 = arith.constant 0 : i32
    %c0_i32_0 = arith.constant 0 : i32
    %c0_i32_1 = arith.constant 0 : i32
    return %c0_i32, %c0_i32_0 : i32, i32
  }
  func.func @transform_6(%arg0: i32) -> (i32, i32) {
    %c0_i32 = arith.constant 0 : i32
    %c0_i32_0 = arith.constant 0 : i32
    %c0_i32_1 = arith.constant 0 : i32
    return %c0_i32, %c0_i32_0 : i32, i32
  }
  func.func @transform_7(%arg0: i32) -> (i32, i32) {
    %c0_i32 = arith.constant 0 : i32
    %c0_i32_0 = arith.constant 0 : i32
    return %arg0, %c0_i32 : i32, i32
  }
}

</mosaic_0001>

<llo_original>
// kernel: _lambda_.1
$region0: #{_lambda_.1}
  #allocation0 [shape = 'u32[]', space=smem, size = 0x4, offset = 0x4, fixed_abs, tag = 'smem constant byte address 0x4 - core index']
  #allocation1 [shape = 'u32[144,128]{1,0:T(1,128)}', space=vmem, size = 0x12000, scoped, tag = 'internal scratch']
  %s0 = inlined_call_operand.hbm [shape: f32[16,256], index: 0, kind: input, shape index: {}]
  %s1 = inlined_call_operand.hbm [shape: f32[256,128], index: 1, kind: input, shape index: {}]
  %s2 = inlined_call_operand.vmem [shape: f32[1,128], index: 2, kind: input, shape index: {}]
  %s3 = inlined_call_operand.hbm [shape: f32[128,128], index: 3, kind: input, shape index: {}]
  %s4 = inlined_call_operand.vmem [shape: f32[1,128], index: 4, kind: input, shape index: {}]
  %s5 = inlined_call_operand.hbm [shape: f32[128,128], index: 5, kind: input, shape index: {}]
  %s6 = inlined_call_operand.vmem [shape: f32[1,128], index: 6, kind: input, shape index: {}]
  %s7 = inlined_call_operand.vmem [shape: f32[16,128], index: 7, kind: output, shape index: {}]
  %s8 = sld [smem:[#allocation0]]
  $region54: #{_lambda_.1} parent=0
    _
  %s10 = ssub.s32 1, %s8
  %s11 = scalar_select 0, %s10, %s8
  $region1: #{_lambda_.1} parent=0
    #allocation2 [shape = 'u8[16384]{0}', space=vmem, size = 0x4000, scoped, tag = 'input window, operand 0, single buffered']
    #allocation3 [shape = 's32[1]{0}', space=sflag, size = 0x4, scoped, tag = 'scoped memory for _lambda_.1']
    #allocation4 [shape = 'u8[131072]{0}', space=vmem, size = 0x20000, scoped, tag = 'input window, operand 1, single buffered']
    #allocation5 [shape = 's32[1]{0}', space=sflag, size = 0x4, scoped, tag = 'scoped memory for _lambda_.1']
    #allocation6 [shape = 'u8[65536]{0}', space=vmem, size = 0x10000, scoped, tag = 'input window, operand 3, single buffered']
    #allocation7 [shape = 'u8[65536]{0}', space=vmem, size = 0x10000, scoped, tag = 'input window, operand 5, single buffered']
    #allocation8 [shape = 's32[1]{0}', space=sflag, size = 0x4, scoped, tag = 'scoped memory for _lambda_.1']
    %12 = vsyncpa [#allocation3], 0
    %13 = vsyncpa [#allocation5], 0
    %14 = vsyncpa [#allocation8], 0
    // Predicated region
    $region2: #{_lambda_.1} parent=1 // pred_check
      _
    $region3: #{_lambda_.1} parent=1 // pred_check_branch
      %16 = sbr.rel (0) target = $region5
    $region4: #{_lambda_.1} parent=1 // pred_region
      %s18 = ssub.s32 512, 512
      %19 = vsyncadd [#allocation3], %s18
      %s20 = sshll.u32 [#allocation2], 4
      %s21 = int_to_ptr.vmem [resolvable:$true] %s20
      %26 = dma.hbm_to_vmem [thread:$0]  %s0, 512, %s21, [#allocation3], 256, 256, 16
    $region5: #{_lambda_.1} parent=1 // pred_fallthru
      _
    // Predicated region
    $region6: #{_lambda_.1} parent=1 // pred_check
      _
    $region7: #{_lambda_.1} parent=1 // pred_check_branch
      %28 = sbr.rel (0) target = $region9
    $region8: #{_lambda_.1} parent=1 // pred_region
      %s30 = ssub.s32 4096, 4096
      %31 = vsyncadd [#allocation5], %s30
      %s32 = sshll.u32 [#allocation4], 4
      %s33 = int_to_ptr.vmem [resolvable:$true] %s32
      %38 = dma.hbm_to_vmem [thread:$0]  %s1, 4096, %s33, [#allocation5], 128, 128, 8
    $region9: #{_lambda_.1} parent=1 // pred_fallthru
      _
    // Predicated region
    $region10: #{_lambda_.1} parent=1 // pred_check
      _
    $region11: #{_lambda_.1} parent=1 // pred_check_branch
      %40 = sbr.rel (0) target = $region13
    $region12: #{_lambda_.1} parent=1 // pred_region
      _
    $region13: #{_lambda_.1} parent=1 // pred_fallthru
      _
    // Predicated region
    $region14: #{_lambda_.1} parent=1 // pred_check
      _
    $region15: #{_lambda_.1} parent=1 // pred_check_branch
      %42 = sbr.rel (0) target = $region17
    $region16: #{_lambda_.1} parent=1 // pred_region
      %s44 = ssub.s32 2048, 2048
      %45 = vsyncadd [#allocation5], %s44
      %s46 = sshll.u32 [#allocation6], 4
      %s47 = int_to_ptr.vmem [resolvable:$true] %s46
      %52 = dma.hbm_to_vmem [thread:$0]  %s3, 2048, %s47, [#allocation5], 128, 128, 8
    $region17: #{_lambda_.1} parent=1 // pred_fallthru
      _
    // Predicated region
    $region18: #{_lambda_.1} parent=1 // pred_check
      _
    $region19: #{_lambda_.1} parent=1 // pred_check_branch
      %54 = sbr.rel (0) target = $region21
    $region20: #{_lambda_.1} parent=1 // pred_region
      _
    $region21: #{_lambda_.1} parent=1 // pred_fallthru
      _
    // Predicated region
    $region22: #{_lambda_.1} parent=1 // pred_check
      _
    $region23: #{_lambda_.1} parent=1 // pred_check_branch
      %56 = sbr.rel (0) target = $region25
    $region24: #{_lambda_.1} parent=1 // pred_region
      %s58 = ssub.s32 2048, 2048
      %59 = vsyncadd [#allocation8], %s58
      %s60 = sshll.u32 [#allocation7], 4
      %s61 = int_to_ptr.vmem [resolvable:$true] %s60
      %66 = dma.hbm_to_vmem [thread:$0]  %s5, 2048, %s61, [#allocation8], 128, 128, 8
    $region25: #{_lambda_.1} parent=1 // pred_fallthru
      _
    // Predicated region
    $region26: #{_lambda_.1} parent=1 // pred_check
      _
    $region27: #{_lambda_.1} parent=1 // pred_check_branch
      %68 = sbr.rel (0) target = $region29
    $region28: #{_lambda_.1} parent=1 // pred_region
      _
    $region29: #{_lambda_.1} parent=1 // pred_fallthru
      _
    // Predicated region
    $region30: #{_lambda_.1} parent=1 // pred_check
      _
    $region31: #{_lambda_.1} parent=1 // pred_check_branch
      %70 = sbr.rel (0) target = $region33
    $region32: #{_lambda_.1} parent=1 // pred_region
      %71 = dma.done [#allocation3], 512
    $region33: #{_lambda_.1} parent=1 // pred_fallthru
      _
    // Predicated region
    $region34: #{_lambda_.1} parent=1 // pred_check
      _
    $region35: #{_lambda_.1} parent=1 // pred_check_branch
      %73 = sbr.rel (0) target = $region37
    $region36: #{_lambda_.1} parent=1 // pred_region
      %74 = dma.done [#allocation5], 4096
    $region37: #{_lambda_.1} parent=1 // pred_fallthru
      _
    // Predicated region
    $region38: #{_lambda_.1} parent=1 // pred_check
      _
    $region39: #{_lambda_.1} parent=1 // pred_check_branch
      %76 = sbr.rel (0) target = $region41
    $region40: #{_lambda_.1} parent=1 // pred_region
      %77 = dma.done [#allocation5], 2048
    $region41: #{_lambda_.1} parent=1 // pred_fallthru
      _
    // Predicated region
    $region42: #{_lambda_.1} parent=1 // pred_check
      _
    $region43: #{_lambda_.1} parent=1 // pred_check_branch
      %79 = sbr.rel (0) target = $region45
    $region44: #{_lambda_.1} parent=1 // pred_region
      %80 = dma.done [#allocation8], 2048
    $region45: #{_lambda_.1} parent=1 // pred_fallthru
      _
    %v81 = vld [vmem:[#allocation2] sm:$0xff]
    %v82 = vld [vmem:[#allocation2 + $0x8] sm:$0xff]
    %v83 = vld [vmem:[#allocation2 + $0x10] sm:$0xff]
    %v84 = vld [vmem:[#allocation2 + $0x18] sm:$0xff]
    %v85 = vld [vmem:[#allocation4] sm:$0xff]
    %v86 = vld [vmem:[#allocation4 + $0x8] sm:$0xff]
    %v87 = vld [vmem:[#allocation4 + $0x10] sm:$0xff]
    %v88 = vld [vmem:[#allocation4 + $0x18] sm:$0xff]
    %v89 = vld [vmem:[#allocation4 + $0x20] sm:$0xff]
    %v90 = vld [vmem:[#allocation4 + $0x28] sm:$0xff]
    %v91 = vld [vmem:[#allocation4 + $0x30] sm:$0xff]
    %v92 = vld [vmem:[#allocation4 + $0x38] sm:$0xff]
    %v93 = vld [vmem:[#allocation4 + $0x40] sm:$0xff]
    %v94 = vld [vmem:[#allocation4 + $0x48] sm:$0xff]
    %v95 = vld [vmem:[#allocation4 + $0x50] sm:$0xff]
    %v96 = vld [vmem:[#allocation4 + $0x58] sm:$0xff]
    %v97 = vld [vmem:[#allocation4 + $0x60] sm:$0xff]
    %v98 = vld [vmem:[#allocation4 + $0x68] sm:$0xff]
    %v99 = vld [vmem:[#allocation4 + $0x70] sm:$0xff]
    %v100 = vld [vmem:[#allocation4 + $0x78] sm:$0xff]
    %v101 = vld [vmem:[#allocation4 + $0x80] sm:$0xff]
    %v102 = vld [vmem:[#allocation4 + $0x88] sm:$0xff]
    %v103 = vld [vmem:[#allocation4 + $0x90] sm:$0xff]
    %v104 = vld [vmem:[#allocation4 + $0x98] sm:$0xff]
    %v105 = vld [vmem:[#allocation4 + $0xa0] sm:$0xff]
    %v106 = vld [vmem:[#allocation4 + $0xa8] sm:$0xff]
    %v107 = vld [vmem:[#allocation4 + $0xb0] sm:$0xff]
    %v108 = vld [vmem:[#allocation4 + $0xb8] sm:$0xff]
    %v109 = vld [vmem:[#allocation4 + $0xc0] sm:$0xff]
    %v110 = vld [vmem:[#allocation4 + $0xc8] sm:$0xff]
    %v111 = vld [vmem:[#allocation4 + $0xd0] sm:$0xff]
    %v112 = vld [vmem:[#allocation4 + $0xd8] sm:$0xff]
    %v113 = vld [vmem:[#allocation4 + $0xe0] sm:$0xff]
    %v114 = vld [vmem:[#allocation4 + $0xe8] sm:$0xff]
    %v115 = vld [vmem:[#allocation4 + $0xf0] sm:$0xff]
    %v116 = vld [vmem:[#allocation4 + $0xf8] sm:$0xff]
    %v117 = vld [vmem:[%s2] sm:$0x1]
    %v119 = vlaneseq
    %v120 = vshrl.u32 %v119, 7
    %v121 = vsub.s32 0, %v120
    %v122 = vrot.slane %v117, %v121
    %124 = vmatprep.subr.mxu0 0.0
    %125 = vmatpush1.msra.mxu0 %v85
    %126 = vmatprep.subr.mxu0 0.0
    %127 = vmatpush1.msra.mxu0 %v86
    %128 = vmatprep.subr.mxu0 0.0
    %129 = vmatpush1.msra.mxu0 %v87
    %130 = vmatprep.subr.mxu0 0.0
    %131 = vmatpush1.msra.mxu0 %v88
    %132 = vmatprep.subr.mxu0 0.0
    %133 = vmatpush1.msra.mxu0 %v89
    %134 = vmatprep.subr.mxu0 0.0
    %135 = vmatpush1.msra.mxu0 %v90
    %136 = vmatprep.subr.mxu0 0.0
    %137 = vmatpush1.msra.mxu0 %v91
    %138 = vmatprep.subr.mxu0 0.0
    %139 = vmatpush1.msra.mxu0 %v92
    %140 = vmatprep.subr.mxu0 0.0
    %141 = vmatpush1.msra.mxu0 %v93
    %142 = vmatprep.subr.mxu0 0.0
    %143 = vmatpush1.msra.mxu0 %v94
    %144 = vmatprep.subr.mxu0 0.0
    %145 = vmatpush1.msra.mxu0 %v95
    %146 = vmatprep.subr.mxu0 0.0
    %147 = vmatpush1.msra.mxu0 %v96
    %148 = vmatprep.subr.mxu0 0.0
    %149 = vmatpush1.msra.mxu0 %v97
    %150 = vmatprep.subr.mxu0 0.0
    %151 = vmatpush1.msra.mxu0 %v98
    %152 = vmatprep.subr.mxu0 0.0
    %153 = vmatpush1.msra.mxu0 %v99
    %154 = vmatprep.subr.mxu0 0.0
    %155 = vmatpush1.msra.mxu0 %v100
    %156 = vmatprep.subr.mxu0 0.0
    %157 = vmatpush1.msra.mxu0 %v101
    %158 = vmatprep.subr.mxu0 0.0
    %159 = vmatpush1.msra.mxu0 %v102
    %160 = vmatprep.subr.mxu0 0.0
    %161 = vmatpush1.msra.mxu0 %v103
    %162 = vmatprep.subr.mxu0 0.0
    %163 = vmatpush1.msra.mxu0 %v104
    %164 = vmatprep.subr.mxu0 0.0
    %165 = vmatpush1.msra.mxu0 %v105
    %166 = vmatprep.subr.mxu0 0.0
    %167 = vmatpush1.msra.mxu0 %v106
    %168 = vmatprep.subr.mxu0 0.0
    %169 = vmatpush1.msra.mxu0 %v107
    %170 = vmatprep.subr.mxu0 0.0
    %171 = vmatpush1.msra.mxu0 %v108
    %172 = vmatprep.subr.mxu0 0.0
    %173 = vmatpush1.msra.mxu0 %v109
    %174 = vmatprep.subr.mxu0 0.0
    %175 = vmatpush1.msra.mxu0 %v110
    %176 = vmatprep.subr.mxu0 0.0
    %177 = vmatpush1.msra.mxu0 %v111
    %178 = vmatprep.subr.mxu0 0.0
    %179 = vmatpush1.msra.mxu0 %v112
    %180 = vmatprep.subr.mxu0 0.0
    %181 = vmatpush1.msra.mxu0 %v113
    %182 = vmatprep.subr.mxu0 0.0
    %183 = vmatpush1.msra.mxu0 %v114
    %184 = vmatprep.subr.mxu0 0.0
    %185 = vmatpush1.msra.mxu0 %v115
    %186 = vmatprep.subr.mxu0 0.0
    %187 = vmatpush1.msra.mxu0 %v116
    %188 = vmatprep.mubr.f32.mxu0 %v82
    %189 = vmatmul.mubr.f32.gmra.mrb[0].mxu0 %v81
    %v190 = vpop.f32.mrb[0].mxu0
    %v191 = vadd.f32 %v122, %v190
    %v192 = vpop.f32.mrb[0].mxu0
    %193 = vmatprep.mubr.f32.mxu0 %v84
    %194 = vmatmul.mubr.f32.gmra.mrb[0].mxu0 %v83
    %v195 = vpop.f32.mrb[0].mxu0
    %v196 = vadd.f32 %v122, %v195
    %v197 = vpop.f32.mrb[0].mxu0
    %198 = vdwg.mxu0
    %v199 = vtanh.pop %v191
    %v200 = vtanh.pop %v196
    %v201 = vld [vmem:[#allocation6] sm:$0xff]
    %v202 = vld [vmem:[#allocation6 + $0x8] sm:$0xff]
    %v203 = vld [vmem:[#allocation6 + $0x10] sm:$0xff]
    %v204 = vld [vmem:[#allocation6 + $0x18] sm:$0xff]
    %v205 = vld [vmem:[#allocation6 + $0x20] sm:$0xff]
    %v206 = vld [vmem:[#allocation6 + $0x28] sm:$0xff]
    %v207 = vld [vmem:[#allocation6 + $0x30] sm:$0xff]
    %v208 = vld [vmem:[#allocation6 + $0x38] sm:$0xff]
    %v209 = vld [vmem:[#allocation6 + $0x40] sm:$0xff]
    %v210 = vld [vmem:[#allocation6 + $0x48] sm:$0xff]
    %v211 = vld [vmem:[#allocation6 + $0x50] sm:$0xff]
    %v212 = vld [vmem:[#allocation6 + $0x58] sm:$0xff]
    %v213 = vld [vmem:[#allocation6 + $0x60] sm:$0xff]
    %v214 = vld [vmem:[#allocation6 + $0x68] sm:$0xff]
    %v215 = vld [vmem:[#allocation6 + $0x70] sm:$0xff]
    %v216 = vld [vmem:[#allocation6 + $0x78] sm:$0xff]
    %v217 = vld [vmem:[%s4] sm:$0x1]
    %v219 = vlaneseq
    %v220 = vshrl.u32 %v219, 7
    %v221 = vsub.s32 0, %v220
    %v222 = vrot.slane %v217, %v221
    %224 = vmatprep.subr.mxu0 0.0
    %225 = vmatpush1.msra.mxu0 %v201
    %226 = vmatprep.subr.mxu0 0.0
    %227 = vmatpush1.msra.mxu0 %v202
    %228 = vmatprep.subr.mxu0 0.0
    %229 = vmatpush1.msra.mxu0 %v203
    %230 = vmatprep.subr.mxu0 0.0
    %231 = vmatpush1.msra.mxu0 %v204
    %232 = vmatprep.subr.mxu0 0.0
    %233 = vmatpush1.msra.mxu0 %v205
    %234 = vmatprep.subr.mxu0 0.0
    %235 = vmatpush1.msra.mxu0 %v206
    %236 = vmatprep.subr.mxu0 0.0
    %237 = vmatpush1.msra.mxu0 %v207
    %238 = vmatprep.subr.mxu0 0.0
    %239 = vmatpush1.msra.mxu0 %v208
    %240 = vmatprep.subr.mxu0 0.0
    %241 = vmatpush1.msra.mxu0 %v209
    %242 = vmatprep.subr.mxu0 0.0
    %243 = vmatpush1.msra.mxu0 %v210
    %244 = vmatprep.subr.mxu0 0.0
    %245 = vmatpush1.msra.mxu0 %v211
    %246 = vmatprep.subr.mxu0 0.0
    %247 = vmatpush1.msra.mxu0 %v212
    %248 = vmatprep.subr.mxu0 0.0
    %249 = vmatpush1.msra.mxu0 %v213
    %250 = vmatprep.subr.mxu0 0.0
    %251 = vmatpush1.msra.mxu0 %v214
    %252 = vmatprep.subr.mxu0 0.0
    %253 = vmatpush1.msra.mxu0 %v215
    %254 = vmatprep.subr.mxu0 0.0
    %255 = vmatpush1.msra.mxu0 %v216
    %256 = vmatprep.subr.mxu0 0.0
    %257 = vmatpush1.msra.mxu0 0.0
    %258 = vmatprep.subr.mxu0 0.0
    %259 = vmatpush1.msra.mxu0 0.0
    %260 = vmatprep.subr.mxu0 0.0
    %261 = vmatpush1.msra.mxu0 0.0
    %262 = vmatprep.subr.mxu0 0.0
    %263 = vmatpush1.msra.mxu0 0.0
    %264 = vmatprep.subr.mxu0 0.0
    %265 = vmatpush1.msra.mxu0 0.0
    %266 = vmatprep.subr.mxu0 0.0
    %267 = vmatpush1.msra.mxu0 0.0
    %268 = vmatprep.subr.mxu0 0.0
    %269 = vmatpush1.msra.mxu0 0.0
    %270 = vmatprep.subr.mxu0 0.0
    %271 = vmatpush1.msra.mxu0 0.0
    %272 = vmatprep.subr.mxu0 0.0
    %273 = vmatpush1.msra.mxu0 0.0
    %274 = vmatprep.subr.mxu0 0.0
    %275 = vmatpush1.msra.mxu0 0.0
    %276 = vmatprep.subr.mxu0 0.0
    %277 = vmatpush1.msra.mxu0 0.0
    %278 = vmatprep.subr.mxu0 0.0
    %279 = vmatpush1.msra.mxu0 0.0
    %280 = vmatprep.subr.mxu0 0.0
    %281 = vmatpush1.msra.mxu0 0.0
    %282 = vmatprep.subr.mxu0 0.0
    %283 = vmatpush1.msra.mxu0 0.0
    %284 = vmatprep.subr.mxu0 0.0
    %285 = vmatpush1.msra.mxu0 0.0
    %286 = vmatprep.subr.mxu0 0.0
    %287 = vmatpush1.msra.mxu0 0.0
    %288 = vmatprep.mubr.f32.mxu0 0.0
    %289 = vmatmul.mubr.f32.gmra.mrb[0].mxu0 %v199
    %v290 = vpop.f32.mrb[0].mxu0
    %v291 = vadd.f32 %v222, %v290
    %v292 = vpop.f32.mrb[0].mxu0
    %293 = vmatprep.mubr.f32.mxu0 0.0
    %294 = vmatmul.mubr.f32.gmra.mrb[0].mxu0 %v200
    %v295 = vpop.f32.mrb[0].mxu0
    %v296 = vadd.f32 %v222, %v295
    %v297 = vpop.f32.mrb[0].mxu0
    %298 = vdwg.mxu0
    %v299 = vtanh.pop %v291
    %v300 = vtanh.pop %v296
    %v301 = vld [vmem:[#allocation7] sm:$0xff]
    %v302 = vld [vmem:[#allocation7 + $0x8] sm:$0xff]
    %v303 = vld [vmem:[#allocation7 + $0x10] sm:$0xff]
    %v304 = vld [vmem:[#allocation7 + $0x18] sm:$0xff]
    %v305 = vld [vmem:[#allocation7 + $0x20] sm:$0xff]
    %v306 = vld [vmem:[#allocation7 + $0x28] sm:$0xff]
    %v307 = vld [vmem:[#allocation7 + $0x30] sm:$0xff]
    %v308 = vld [vmem:[#allocation7 + $0x38] sm:$0xff]
    %v309 = vld [vmem:[#allocation7 + $0x40] sm:$0xff]
    %v310 = vld [vmem:[#allocation7 + $0x48] sm:$0xff]
    %v311 = vld [vmem:[#allocation7 + $0x50] sm:$0xff]
    %v312 = vld [vmem:[#allocation7 + $0x58] sm:$0xff]
    %v313 = vld [vmem:[#allocation7 + $0x60] sm:$0xff]
    %v314 = vld [vmem:[#allocation7 + $0x68] sm:$0xff]
    %v315 = vld [vmem:[#allocation7 + $0x70] sm:$0xff]
    %v316 = vld [vmem:[#allocation7 + $0x78] sm:$0xff]
    %v317 = vld [vmem:[%s6] sm:$0x1]
    %v319 = vlaneseq
    %v320 = vshrl.u32 %v319, 7
    %v321 = vsub.s32 0, %v320
    %v322 = vrot.slane %v317, %v321
    %324 = vmatprep.subr.mxu0 0.0
    %325 = vmatpush1.msra.mxu0 %v301
    %326 = vmatprep.subr.mxu0 0.0
    %327 = vmatpush1.msra.mxu0 %v302
    %328 = vmatprep.subr.mxu0 0.0
    %329 = vmatpush1.msra.mxu0 %v303
    %330 = vmatprep.subr.mxu0 0.0
    %331 = vmatpush1.msra.mxu0 %v304
    %332 = vmatprep.subr.mxu0 0.0
    %333 = vmatpush1.msra.mxu0 %v305
    %334 = vmatprep.subr.mxu0 0.0
    %335 = vmatpush1.msra.mxu0 %v306
    %336 = vmatprep.subr.mxu0 0.0
    %337 = vmatpush1.msra.mxu0 %v307
    %338 = vmatprep.subr.mxu0 0.0
    %339 = vmatpush1.msra.mxu0 %v308
    %340 = vmatprep.subr.mxu0 0.0
    %341 = vmatpush1.msra.mxu0 %v309
    %342 = vmatprep.subr.mxu0 0.0
    %343 = vmatpush1.msra.mxu0 %v310
    %344 = vmatprep.subr.mxu0 0.0
    %345 = vmatpush1.msra.mxu0 %v311
    %346 = vmatprep.subr.mxu0 0.0
    %347 = vmatpush1.msra.mxu0 %v312
    %348 = vmatprep.subr.mxu0 0.0
    %349 = vmatpush1.msra.mxu0 %v313
    %350 = vmatprep.subr.mxu0 0.0
    %351 = vmatpush1.msra.mxu0 %v314
    %352 = vmatprep.subr.mxu0 0.0
    %353 = vmatpush1.msra.mxu0 %v315
    %354 = vmatprep.subr.mxu0 0.0
    %355 = vmatpush1.msra.mxu0 %v316
    %356 = vmatprep.subr.mxu0 0.0
    %357 = vmatpush1.msra.mxu0 0.0
    %358 = vmatprep.subr.mxu0 0.0
    %359 = vmatpush1.msra.mxu0 0.0
    %360 = vmatprep.subr.mxu0 0.0
    %361 = vmatpush1.msra.mxu0 0.0
    %362 = vmatprep.subr.mxu0 0.0
    %363 = vmatpush1.msra.mxu0 0.0
    %364 = vmatprep.subr.mxu0 0.0
    %365 = vmatpush1.msra.mxu0 0.0
    %366 = vmatprep.subr.mxu0 0.0
    %367 = vmatpush1.msra.mxu0 0.0
    %368 = vmatprep.subr.mxu0 0.0
    %369 = vmatpush1.msra.mxu0 0.0
    %370 = vmatprep.subr.mxu0 0.0
    %371 = vmatpush1.msra.mxu0 0.0
    %372 = vmatprep.subr.mxu0 0.0
    %373 = vmatpush1.msra.mxu0 0.0
    %374 = vmatprep.subr.mxu0 0.0
    %375 = vmatpush1.msra.mxu0 0.0
    %376 = vmatprep.subr.mxu0 0.0
    %377 = vmatpush1.msra.mxu0 0.0
    %378 = vmatprep.subr.mxu0 0.0
    %379 = vmatpush1.msra.mxu0 0.0
    %380 = vmatprep.subr.mxu0 0.0
    %381 = vmatpush1.msra.mxu0 0.0
    %382 = vmatprep.subr.mxu0 0.0
    %383 = vmatpush1.msra.mxu0 0.0
    %384 = vmatprep.subr.mxu0 0.0
    %385 = vmatpush1.msra.mxu0 0.0
    %386 = vmatprep.subr.mxu0 0.0
    %387 = vmatpush1.msra.mxu0 0.0
    %388 = vmatprep.mubr.f32.mxu0 0.0
    %389 = vmatmul.mubr.f32.gmra.mrb[0].mxu0 %v299
    %v390 = vpop.f32.mrb[0].mxu0
    %v391 = vadd.f32 %v322, %v390
    %v392 = vpop.f32.mrb[0].mxu0
    %393 = vmatprep.mubr.f32.mxu0 0.0
    %394 = vmatmul.mubr.f32.gmra.mrb[0].mxu0 %v300
    %v395 = vpop.f32.mrb[0].mxu0
    %v396 = vadd.f32 %v322, %v395
    %v397 = vpop.f32.mrb[0].mxu0
    %398 = vdwg.mxu0
    %399 = vst [vmem:[%s7] sm:$0xff] %v391
    %400 = vst [vmem:[%s7 + $0x8] sm:$0xff] %v396
    // Predicated region
    $region46: #{_lambda_.1} parent=1 // pred_check
      _
    $region47: #{_lambda_.1} parent=1 // pred_check_branch
      %402 = sbr.rel (0) target = $region49
    $region48: #{_lambda_.1} parent=1 // pred_region
      _
    $region49: #{_lambda_.1} parent=1 // pred_fallthru
      _
    // Predicated region
    $region50: #{_lambda_.1} parent=1 // pred_check
      _
    $region51: #{_lambda_.1} parent=1 // pred_check_branch
      %404 = sbr.rel (0) target = $region53
    $region52: #{_lambda_.1} parent=1 // pred_region
      _
    $region53: #{_lambda_.1} parent=1 // pred_fallthru
      _
    %405 = vsyncpa [#allocation3], 1
    %406 = vsyncpa [#allocation5], 1
    %407 = vsyncpa [#allocation8], 1

</llo_original>
